<compile_context>
chip_gen: v5e
topology: v5e:2x2
jax: 0.10.0
libtpu: 0.0.40
codegen_flags: <defaults>
</compile_context>

<pallas_src>
import functools

import jax
import jax.numpy as jnp
from jax.experimental import pallas as pl
from jax.experimental.pallas import tpu as pltpu


def _round_up(x, m):
    return ((x + m - 1) // m) * m


def _cdiv(a, b):
    return -(-a // b)


def _choose_tile_n(n, c, itemsize, target_tile_bytes=1 << 20,
                   max_tile_bytes=4 << 20):
    """Pick the lane-axis tile (samples per grid step).

    Sized so each step moves ~target_tile_bytes of logits, capped so the
    double-buffered tile (plus in-kernel f32 temps) fits a 32 MiB scoped VMEM
    budget (v7x-safe), and shrunk so there are >= 2 grid steps when N allows
    (keeps both v7x TensorCores busy).  TILE_N lives on the lane axis, so it
    only needs to be a multiple of 128 (or the full N) independent of dtype;
    the sublane axis is the full class dim, so no per-dtype sublane rounding
    is needed.
    """
    if n <= 128:
        return n                                   # single full block
    c_pad = _round_up(max(c, 1), 8)
    per_lane_bytes = c_pad * itemsize
    tn = max(128, (target_tile_bytes // per_lane_bytes) // 128 * 128)
    max_tn = max(128, (max_tile_bytes // per_lane_bytes) // 128 * 128)
    tn = min(tn, max_tn)
    n_pad = _round_up(n, 128)
    tn = min(tn, n_pad)
    if _cdiv(n_pad, tn) < 2:                       # ensure >= 2 tiles for v7x
        tn = _round_up(_cdiv(n_pad, 2), 128)
    return tn


def _focal_loss_kernel(logits_ref, targets_ref, alpha_ref, out_ref, *, gamma,
                       n_total, tile_n):
    """Per-sample focal loss for one (C, TILE_N) tile (samples on lanes).

    logits_ref : (C, TILE_N) float  VMEM   (classes on sublanes)
    targets_ref: (1, TILE_N) int32  VMEM
    alpha_ref  : (C, 1)      f32    VMEM   (per-class alpha)
    out_ref    : (1, TILE_N) f32    VMEM   (per-sample loss, lane-dense)
    """
    i = pl.program_id(0)
    last = pl.num_programs(0) - 1

    x = logits_ref[...].astype(jnp.float32)        # one bulk up-cast per tile
    tgt = targets_ref[...]                         # (1, TILE_N) int32
    alpha = alpha_ref[...].astype(jnp.float32)     # (C, 1)

    c, tn = x.shape
    class_ids = jax.lax.broadcasted_iota(jnp.int32, (c, tn), 0)
    mask = class_ids == tgt                        # bool (C, TILE_N), no f32 onehot

    # Numerically stable cross entropy per sample (sublane-axis reductions).
    m = jnp.max(x, axis=0, keepdims=True)                              # (1, TILE_N)
    lse = m + jnp.log(jnp.sum(jnp.exp(x - m), axis=0, keepdims=True))  # (1, TILE_N)
    tgt_logit = jnp.sum(jnp.where(mask, x, 0.0), axis=0, keepdims=True)
    ce = lse - tgt_logit                                               # (1, TILE_N)

    pt = jnp.exp(-ce)
    alpha_t = jnp.sum(jnp.where(mask, alpha, 0.0), axis=0, keepdims=True)

    # Clamp: ce can round to a tiny negative -> pt > 1; keeps jnp.power finite.
    one_minus_pt = jnp.maximum(1.0 - pt, 0.0)
    g = float(gamma)
    if g == 2.0:
        mod = jnp.square(one_minus_pt)             # VPU mul; keeps the EUP free
    elif g.is_integer() and g >= 0.0:
        mod = jax.lax.integer_pow(one_minus_pt, int(g))
    else:
        mod = jnp.power(one_minus_pt, g)           # exp/log fallback

    focal = alpha_t * mod * ce                     # (1, TILE_N)

    @pl.when(i < last)
    def _():                                       # full tile: plain wide store
        out_ref[...] = focal

    @pl.when(i == last)
    def _():                                       # ragged tile: select-mask pad lanes
        col = i * tile_n + jax.lax.broadcasted_iota(jnp.int32, (1, tn), 1)
        out_ref[...] = jnp.where(col < n_total, focal, 0.0)


def focal_loss(logits, targets, alpha_vec, gamma=2.0, reduction="mean",
               target_tile_bytes=1 << 20, vmem_limit_bytes=32 * 1024 * 1024):
    """FocalLoss(alpha_vec, gamma, reduction)(logits, targets) on TPU.

    logits: (N, C) float, targets: (N,) int, alpha_vec: (C,) float.
    vmem_limit_bytes defaults to 32 MiB (safe on v7x); on v5e/v6e it can be
    raised (64-100 MiB) together with target_tile_bytes for very large C.
    """
    n, c = logits.shape

    # Layout plumbing: samples on lanes, classes on sublanes.
    logits_t = jnp.transpose(logits)                       # (C, N)
    tgt2d = targets.astype(jnp.int32).reshape(1, n)        # (1, N)
    alpha2d = alpha_vec.astype(jnp.float32).reshape(c, 1)  # (C, 1)

    itemsize = jnp.dtype(logits.dtype).itemsize
    tn = _choose_tile_n(n, c, itemsize, target_tile_bytes)
    num_tiles = _cdiv(n, tn)

    kernel = functools.partial(
        _focal_loss_kernel, gamma=float(gamma), n_total=n, tile_n=tn)

    cost = pl.CostEstimate(
        flops=8 * n * c + 12 * n,
        transcendentals=n * c + 3 * n,
        bytes_accessed=n * c * itemsize + n * 4 + c * 4 + n * 4,
    )

    per_sample = pl.pallas_call(
        kernel,
        out_shape=jax.ShapeDtypeStruct((1, n), jnp.float32),
        grid=(num_tiles,),
        in_specs=[
            pl.BlockSpec((c, tn), lambda i: (0, i)),   # logits tile (C, TILE_N)
            pl.BlockSpec((1, tn), lambda i: (0, i)),   # targets tile
            pl.BlockSpec((c, 1), lambda i: (0, 0)),    # per-class alpha (resident)
        ],
        out_specs=pl.BlockSpec((1, tn), lambda i: (0, i)),
        compiler_params=pltpu.CompilerParams(
            dimension_semantics=("parallel",),
            vmem_limit_bytes=vmem_limit_bytes,
        ),
        cost_estimate=cost,
    )(logits_t, tgt2d, alpha2d)

    if reduction == "mean":
        return jnp.sum(per_sample) / jnp.float32(n)
    elif reduction == "sum":
        return jnp.sum(per_sample)
    else:                                              # 'none'
        return per_sample.reshape(n)


def _focal_loss_ref(logits, targets, alpha_vec, gamma=2.0, reduction="mean"):
    """Pure-JAX reference mirroring the PyTorch forward."""
    logits = logits.astype(jnp.float32)
    logp = jax.nn.log_softmax(logits, axis=-1)
    ce = -jnp.take_along_axis(logp, targets[:, None].astype(jnp.int32), axis=-1)[:, 0]
    pt = jnp.exp(-ce)
    alpha_t = alpha_vec[targets]
    fl = alpha_t * (1.0 - pt) ** gamma * ce
    if reduction == "mean":
        return jnp.mean(fl)
    elif reduction == "sum":
        return jnp.sum(fl)
    return fl


if __name__ == "__main__":
    key = jax.random.PRNGKey(0)
    k1, k2, k3, k4 = jax.random.split(key, 4)

    C = 32
    alpha_vec = jnp.full((C,), 0.25, dtype=jnp.float32)  # module default alpha=0.25 per class

    # Case 1: small single-tile shape (N=8, C=32) -> lane dim == full array dim.
    N1 = 8
    logits1 = jax.random.normal(k1, (N1, C), dtype=jnp.float32)
    targets1 = jax.random.randint(k2, (N1,), 0, C, dtype=jnp.int32)
    loss1 = jax.block_until_ready(focal_loss(logits1, targets1, alpha_vec, gamma=2.0))
    ref1 = _focal_loss_ref(logits1, targets1, alpha_vec, gamma=2.0)
    assert jnp.allclose(loss1, ref1, rtol=1e-5, atol=1e-6), (loss1, ref1)

    # Case 2: multi-tile grid with a ragged last tile (N=200 -> 2 tiles of 128).
    N2 = 200
    logits2 = jax.random.normal(k3, (N2, C), dtype=jnp.float32) * 3.0
    targets2 = jax.random.randint(k4, (N2,), 0, C, dtype=jnp.int32)
    loss2 = jax.block_until_ready(focal_loss(logits2, targets2, alpha_vec, gamma=2.0))
    ref2 = _focal_loss_ref(logits2, targets2, alpha_vec, gamma=2.0)
    assert jnp.allclose(loss2, ref2, rtol=1e-5, atol=1e-6), (loss2, ref2)

    # Case 3: non-default integer gamma (integer_pow path).
    loss3 = jax.block_until_ready(focal_loss(logits2, targets2, alpha_vec, gamma=3.0))
    ref3 = _focal_loss_ref(logits2, targets2, alpha_vec, gamma=3.0)
    assert jnp.allclose(loss3, ref3, rtol=1e-5, atol=1e-6), (loss3, ref3)

    # Case 4: reduction='none' (checks the lane-dense per-sample output / masking).
    per = jax.block_until_ready(
        focal_loss(logits2, targets2, alpha_vec, gamma=2.0, reduction="none"))
    ref_per = _focal_loss_ref(logits2, targets2, alpha_vec, gamma=2.0, reduction="none")
    assert jnp.allclose(per, ref_per, rtol=1e-5, atol=1e-6)

    print("KERNEL_OK")
</pallas_src>

<mosaic_0001>
module attributes {stable_mosaic.version = 11 : i64} {
  func.func @_focal_loss_kernel(%arg0: i32, %arg1: memref<32x8xf32, #tpu.memory_space<vmem>>, %arg2: memref<1x8xi32, #tpu.memory_space<vmem>>, %arg3: memref<32x1xf32, #tpu.memory_space<vmem>>, %arg4: memref<1x8xf32, #tpu.memory_space<vmem>>) attributes {dimension_semantics = [#tpu.dimension_semantics<parallel>], iteration_bounds = array<i64: 1>, scalar_prefetch = 0 : i64, scratch_operands = 0 : i64, tpu.core_type = #tpu.core_type<tc>, window_params = [{transform_indices = @transform_0, window_bounds = array<i64: 32, 8>}, {transform_indices = @transform_1, window_bounds = array<i64: 1, 8>}, {pipeline_mode = #tpu.pipeline_mode<synchronous>, transform_indices = @transform_2, window_bounds = array<i64: 32, 1>}, {transform_indices = @transform_3, window_bounds = array<i64: 1, 8>}]} {
    %c0 = arith.constant 0 : index
    %c0_0 = arith.constant 0 : index
    %0 = vector.load %arg1[%c0, %c0_0] : memref<32x8xf32, #tpu.memory_space<vmem>>, vector<32x8xf32>
    %c0_1 = arith.constant 0 : index
    %c0_2 = arith.constant 0 : index
    %1 = vector.load %arg2[%c0_1, %c0_2] : memref<1x8xi32, #tpu.memory_space<vmem>>, vector<1x8xi32>
    %c0_3 = arith.constant 0 : index
    %c0_4 = arith.constant 0 : index
    %2 = vector.load %arg3[%c0_3, %c0_4] : memref<32x1xf32, #tpu.memory_space<vmem>>, vector<32x1xf32>
    %3 = tpu.iota {dimensions = array<i32: 0>} : vector<32x8xi32>
    %4 = vector.broadcast %1 : vector<1x8xi32> to vector<32x8xi32>
    %5 = arith.cmpi eq, %3, %4 : vector<32x8xi32>
    %cst = arith.constant dense<0xFF800000> : vector<8xf32>
    %6 = vector.multi_reduction <maximumf>, %0, %cst [0] : vector<32x8xf32> to vector<8xf32>
    %7 = vector.shape_cast %6 : vector<8xf32> to vector<1x8xf32>
    %8 = vector.broadcast %7 : vector<1x8xf32> to vector<32x8xf32>
    %9 = arith.subf %0, %8 : vector<32x8xf32>
    %10 = math.exp %9 : vector<32x8xf32>
    %cst_5 = arith.constant dense<0.000000e+00> : vector<8xf32>
    %11 = vector.multi_reduction <add>, %10, %cst_5 [0] : vector<32x8xf32> to vector<8xf32>
    %12 = vector.shape_cast %11 : vector<8xf32> to vector<1x8xf32>
    %13 = math.log %12 : vector<1x8xf32>
    %14 = arith.addf %7, %13 : vector<1x8xf32>
    %cst_6 = arith.constant 0.000000e+00 : f32
    %15 = vector.broadcast %cst_6 : f32 to vector<32x8xf32>
    %16 = arith.select %5, %0, %15 : vector<32x8xi1>, vector<32x8xf32>
    %cst_7 = arith.constant dense<0.000000e+00> : vector<8xf32>
    %17 = vector.multi_reduction <add>, %16, %cst_7 [0] : vector<32x8xf32> to vector<8xf32>
    %18 = vector.shape_cast %17 : vector<8xf32> to vector<1x8xf32>
    %19 = arith.subf %14, %18 : vector<1x8xf32>
    %cst_8 = arith.constant 0.000000e+00 : f32
    %20 = vector.broadcast %cst_8 : f32 to vector<1x8xf32>
    %21 = arith.subf %20, %19 : vector<1x8xf32>
    %22 = math.exp %21 : vector<1x8xf32>
    %cst_9 = arith.constant 0.000000e+00 : f32
    %23 = vector.shape_cast %2 : vector<32x1xf32> to vector<32x1xf32>
    %24 = vector.broadcast %23 : vector<32x1xf32> to vector<32x8xf32>
    %25 = vector.broadcast %cst_9 : f32 to vector<32x8xf32>
    %26 = arith.select %5, %24, %25 : vector<32x8xi1>, vector<32x8xf32>
    %cst_10 = arith.constant dense<0.000000e+00> : vector<8xf32>
    %27 = vector.multi_reduction <add>, %26, %cst_10 [0] : vector<32x8xf32> to vector<8xf32>
    %28 = vector.shape_cast %27 : vector<8xf32> to vector<1x8xf32>
    %cst_11 = arith.constant 1.000000e+00 : f32
    %29 = vector.broadcast %cst_11 : f32 to vector<1x8xf32>
    %30 = arith.subf %29, %22 : vector<1x8xf32>
    %cst_12 = arith.constant 0.000000e+00 : f32
    %31 = vector.broadcast %cst_12 : f32 to vector<1x8xf32>
    %32 = arith.maximumf %30, %31 : vector<1x8xf32>
    %33 = arith.mulf %32, %32 : vector<1x8xf32>
    %34 = arith.mulf %28, %33 : vector<1x8xf32>
    %35 = arith.mulf %34, %19 : vector<1x8xf32>
    %c0_i32 = arith.constant 0 : i32
    %36 = arith.cmpi slt, %arg0, %c0_i32 : i32
    %37 = arith.extui %36 : i1 to i32
    %c0_i32_13 = arith.constant 0 : i32
    %38 = arith.cmpi ne, %37, %c0_i32_13 : i32
    scf.if %38 {
      %c0_16 = arith.constant 0 : index
      %c0_17 = arith.constant 0 : index
      %42 = vector.load %arg4[%c0_16, %c0_17] : memref<1x8xf32, #tpu.memory_space<vmem>>, vector<1x8xf32>
      tpu.vector_store %arg4[%c0_16, %c0_17], %35 {strides = array<i32>} : memref<1x8xf32, #tpu.memory_space<vmem>>, vector<1x8xf32>,
    } else {
    }
    %c0_i32_14 = arith.constant 0 : i32
    %39 = arith.cmpi eq, %arg0, %c0_i32_14 : i32
    %40 = arith.extui %39 : i1 to i32
    %c0_i32_15 = arith.constant 0 : i32
    %41 = arith.cmpi ne, %40, %c0_i32_15 : i32
    scf.if %41 {
      %c8_i32 = arith.constant 8 : i32
      %42 = arith.muli %arg0, %c8_i32 : i32
      %43 = tpu.iota {dimensions = array<i32: 1>} : vector<1x8xi32>
      %44 = vector.broadcast %42 : i32 to vector<1x8xi32>
      %45 = arith.addi %44, %43 : vector<1x8xi32>
      %c8_i32_16 = arith.constant 8 : i32
      %46 = vector.broadcast %c8_i32_16 : i32 to vector<1x8xi32>
      %47 = arith.cmpi slt, %45, %46 : vector<1x8xi32>
      %cst_17 = arith.constant 0.000000e+00 : f32
      %48 = vector.broadcast %cst_17 : f32 to vector<1x8xf32>
      %49 = arith.select %47, %35, %48 : vector<1x8xi1>, vector<1x8xf32>
      %c0_18 = arith.constant 0 : index
      %c0_19 = arith.constant 0 : index
      %50 = vector.load %arg4[%c0_18, %c0_19] : memref<1x8xf32, #tpu.memory_space<vmem>>, vector<1x8xf32>
      tpu.vector_store %arg4[%c0_18, %c0_19], %49 {strides = array<i32>} : memref<1x8xf32, #tpu.memory_space<vmem>>, vector<1x8xf32>,
    } else {
    }
    return
  }
  func.func @transform_0(%arg0: i32) -> (i32, i32) {
    %c0_i32 = arith.constant 0 : i32
    %c0_i32_0 = arith.constant 0 : i32
    return %c0_i32, %arg0 : i32, i32
  }
  func.func @transform_1(%arg0: i32) -> (i32, i32) {
    %c0_i32 = arith.constant 0 : i32
    %c0_i32_0 = arith.constant 0 : i32
    return %c0_i32, %arg0 : i32, i32
  }
  func.func @transform_2(%arg0: i32) -> (i32, i32) {
    %c0_i32 = arith.constant 0 : i32
    %c0_i32_0 = arith.constant 0 : i32
    %c0_i32_1 = arith.constant 0 : i32
    return %c0_i32, %c0_i32_0 : i32, i32
  }
  func.func @transform_3(%arg0: i32) -> (i32, i32) {
    %c0_i32 = arith.constant 0 : i32
    %c0_i32_0 = arith.constant 0 : i32
    return %c0_i32, %arg0 : i32, i32
  }
}

</mosaic_0001>

<llo_original>
// kernel: tpu_custom_call.1
$region0: #{tpu_custom_call.1}
  #allocation0 [shape = 'u32[]', space=smem, size = 0x4, offset = 0x4, fixed_abs, tag = 'smem constant byte address 0x4 - core index']
  #allocation1 [shape = 'u32[72,128]{1,0:T(1,128)}', space=vmem, size = 0x9000, scoped, tag = 'internal scratch']
  %s0 = inlined_call_operand.vmem [shape: f32[32,8], index: 0, kind: input, shape index: {}]
  %s1 = inlined_call_operand.vmem [shape: s32[1,8], index: 1, kind: input, shape index: {}]
  %s2 = inlined_call_operand.vmem [shape: f32[32,1], index: 2, kind: input, shape index: {}]
  %s3 = inlined_call_operand.hbm [shape: f32[1,8], index: 3, kind: output, shape index: {}]
  %s4 = sld [smem:[#allocation0]]
  $region30: #{tpu_custom_call.1} parent=0
    _
  %s6 = ssub.s32 1, %s4
  %s7 = scalar_select 0, %s6, %s4
  $region1: #{tpu_custom_call.1} parent=0
    #allocation2 [shape = 'u8[512]{0}', space=vmem, size = 0x400, scoped, tag = 'output window, operand 0, single buffered']
    #allocation3 [shape = 's32[1]{0}', space=sflag, size = 0x4, scoped, tag = 'scoped memory for tpu_custom_call.1']
    %8 = vsyncpa [#allocation3], 0
    // Predicated region
    $region2: #{tpu_custom_call.1} parent=1 // pred_check
      _
    $region3: #{tpu_custom_call.1} parent=1 // pred_check_branch
      %10 = sbr.rel (0) target = $region5
    $region4: #{tpu_custom_call.1} parent=1 // pred_region
      _
    $region5: #{tpu_custom_call.1} parent=1 // pred_fallthru
      _
    // Predicated region
    $region6: #{tpu_custom_call.1} parent=1 // pred_check
      _
    $region7: #{tpu_custom_call.1} parent=1 // pred_check_branch
      %12 = sbr.rel (0) target = $region9
    $region8: #{tpu_custom_call.1} parent=1 // pred_region
      _
    $region9: #{tpu_custom_call.1} parent=1 // pred_fallthru
      _
    // Predicated region
    $region10: #{tpu_custom_call.1} parent=1 // pred_check
      _
    $region11: #{tpu_custom_call.1} parent=1 // pred_check_branch
      %14 = sbr.rel (0) target = $region13
    $region12: #{tpu_custom_call.1} parent=1 // pred_region
      _
    $region13: #{tpu_custom_call.1} parent=1 // pred_fallthru
      _
    %v15 = vld [vmem:[%s0] sm:$0xff]
    %v16 = vld [vmem:[%s0 + $0x8] sm:$0xff]
    %v17 = vld [vmem:[%s0 + $0x10] sm:$0xff]
    %v18 = vld [vmem:[%s0 + $0x18] sm:$0xff]
    %v19 = vld [vmem:[%s1] sm:$0x1]
    %v20 = vld [vmem:[%s2] sm:$0xff]
    %v21 = vld [vmem:[%s2 + $0x8] sm:$0xff]
    %v22 = vld [vmem:[%s2 + $0x10] sm:$0xff]
    %v23 = vld [vmem:[%s2 + $0x18] sm:$0xff]
    %v24 = vlaneseq
    %v25 = vshrl.u32 %v24, 7
    %v26 = vadd.s32 %v25, 8
    %v27 = vadd.s32 %v25, 16
    %v28 = vadd.s32 %v25, 24
    %v29 = vperm.slane %v19, 0
    %vm30 = vcmp.eq.s32.totalorder %v25, %v29
    %vm31 = vcmp.eq.s32.totalorder %v26, %v29
    %vm32 = vcmp.eq.s32.totalorder %v27, %v29
    %vm33 = vcmp.eq.s32.totalorder %v28, %v29
    %vm34 = vcmask 64512
    %v35 = vsel %vm34, %v15, -inf
    %v36 = vsel %vm34, %v16, -inf
    %v37 = vsel %vm34, %v17, -inf
    %v38 = vsel %vm34, %v18, -inf
    %v39 = vmax.f32 %v35, %v36
    %v40 = vmax.f32 %v37, %v38
    %v41 = vmax.f32 %v39, %v40
    %v42 = vrot.slane %v41, 4
    %v43 = vmax.f32 %v41, %v42
    %v44 = vrot.slane %v43, 2
    %v45 = vmax.f32 %v43, %v44
    %v46 = vrot.slane %v45, 1
    %v47 = vmax.f32 %v45, %v46
    %v48 = vsub.f32 %v15, %v47
    %v49 = vsub.f32 %v16, %v47
    %v50 = vsub.f32 %v17, %v47
    %v51 = vsub.f32 %v18, %v47
    %v52 = vmul.f32 %v48, 1.442695
    %v53 = vpow.pop %v52
    %v54 = vmul.f32 %v49, 1.442695
    %v55 = vpow.pop %v54
    %v56 = vmul.f32 %v50, 1.442695
    %v57 = vpow.pop %v56
    %v58 = vmul.f32 %v51, 1.442695
    %v59 = vpow.pop %v58
    %v60 = vsel %vm34, %v53, 0.0
    %v61 = vsel %vm34, %v55, 0.0
    %v62 = vadd.f32 %v60, %v61
    %v63 = vsel %vm34, %v57, 0.0
    %v64 = vadd.f32 %v62, %v63
    %v65 = vsel %vm34, %v59, 0.0
    %v66 = vadd.f32 %v64, %v65
    %v67 = vrot.slane %v66, 4
    %v68 = vadd.f32 %v66, %v67
    %v69 = vrot.slane %v68, 2
    %v70 = vadd.f32 %v68, %v69
    %v71 = vrot.slane %v70, 1
    %v72 = vadd.f32 %v70, %v71
    %v73 = vlog2.pop %v72
    %v74 = vmul.f32 %v73, 0.6931472
    %v75 = vadd.f32 %v47, %v74
    %v76 = vsel %vm30, %v15, 0.0
    %v77 = vsel %vm31, %v16, 0.0
    %v78 = vsel %vm32, %v17, 0.0
    %v79 = vsel %vm33, %v18, 0.0
    %v80 = vsel %vm34, %v76, 0.0
    %v81 = vsel %vm34, %v77, 0.0
    %v82 = vadd.f32 %v80, %v81
    %v83 = vsel %vm34, %v78, 0.0
    %v84 = vadd.f32 %v82, %v83
    %v85 = vsel %vm34, %v79, 0.0
    %v86 = vadd.f32 %v84, %v85
    %v87 = vrot.slane %v86, 4
    %v88 = vadd.f32 %v86, %v87
    %v89 = vrot.slane %v88, 2
    %v90 = vadd.f32 %v88, %v89
    %v91 = vrot.slane %v90, 1
    %v92 = vadd.f32 %v90, %v91
    %v93 = vsub.f32 %v75, %v92
    %v94 = vsub.f32 0.0, %v93
    %v95 = vmul.f32 %v94, 1.442695
    %v96 = vpow.pop %v95
    %98 = vset.pattern.permute.xlu0 0
    %99 = vperm.xlu0 %98, %v20
    %v100 = vpop.permute.xlu0 %99
    %103 = vset.pattern.permute.xlu0 0
    %104 = vperm.xlu0 %103, %v21
    %v105 = vpop.permute.xlu0 %104
    %108 = vset.pattern.permute.xlu0 0
    %109 = vperm.xlu0 %108, %v22
    %v110 = vpop.permute.xlu0 %109
    %113 = vset.pattern.permute.xlu0 0
    %114 = vperm.xlu0 %113, %v23
    %v115 = vpop.permute.xlu0 %114
    %v117 = vsel %vm30, %v100, 0.0
    %v118 = vsel %vm31, %v105, 0.0
    %v119 = vsel %vm32, %v110, 0.0
    %v120 = vsel %vm33, %v115, 0.0
    %v121 = vsel %vm34, %v117, 0.0
    %v122 = vsel %vm34, %v118, 0.0
    %v123 = vadd.f32 %v121, %v122
    %v124 = vsel %vm34, %v119, 0.0
    %v125 = vadd.f32 %v123, %v124
    %v126 = vsel %vm34, %v120, 0.0
    %v127 = vadd.f32 %v125, %v126
    %v128 = vrot.slane %v127, 4
    %v129 = vadd.f32 %v127, %v128
    %v130 = vrot.slane %v129, 2
    %v131 = vadd.f32 %v129, %v130
    %v132 = vrot.slane %v131, 1
    %v133 = vadd.f32 %v131, %v132
    %v134 = vsub.f32 1.0, %v96
    %v135 = vmax.f32 %v134, 0.0
    %v136 = vmul.f32 %v135, %v135
    %v137 = vmul.f32 %v133, %v136
    %v138 = vmul.f32 %v137, %v93
    %p139 = scmp.lt.s32.totalorder 0, 0
    // Predicated region
    $region14: #{tpu_custom_call.1} parent=1 // pred_check
      %p140 = pneg %p139
    $region15: #{tpu_custom_call.1} parent=1 // pred_check_branch
      %142 = sbr.rel (%p140) target = $region17
    $region16: #{tpu_custom_call.1} parent=1 // pred_region
      %vm143 = vcmask 57344
      %144 = vst.msk [vmem:[#allocation2] sm:$0x1] %vm143, %v138
    $region17: #{tpu_custom_call.1} parent=1 // pred_fallthru
      _
    %p145 = scmp.eq.s32.totalorder 0, 0
    // Predicated region
    $region18: #{tpu_custom_call.1} parent=1 // pred_check
      %p146 = pneg %p145
    $region19: #{tpu_custom_call.1} parent=1 // pred_check_branch
      %148 = sbr.rel (%p146) target = $region21
    $region20: #{tpu_custom_call.1} parent=1 // pred_region
      %s149 = smul.u32 0, 8
      %v150 = vlaneseq
      %v151 = vand.u32 %v150, 127
      %v152 = vstv %s149
      %v153 = vadd.s32 %v152, %v151
      %vm154 = vcmp.lt.s32.totalorder %v153, 8
      %v155 = vsel %vm154, %v138, 0.0
      %vm156 = vcmask 57344
      %157 = vst.msk [vmem:[#allocation2] sm:$0x1] %vm156, %v155
    $region21: #{tpu_custom_call.1} parent=1 // pred_fallthru
      _
    // Predicated region
    $region22: #{tpu_custom_call.1} parent=1 // pred_check
      _
    $region23: #{tpu_custom_call.1} parent=1 // pred_check_branch
      %159 = sbr.rel (0) target = $region25
    $region24: #{tpu_custom_call.1} parent=1 // pred_region
      %161 = vsyncadd [#allocation3], 0
      %s163 = sshll.u32 [#allocation2], 4
      %s164 = int_to_ptr.vmem [resolvable:$true] %s163
      %s165 = sshll.u32 %s3, 4
      %s166 = int_to_ptr.hbm [resolvable:$true] %s165
      %168 = dma.vmem_to_hbm [thread:$0]  %s164, 16, %s166, [#allocation3]
    $region25: #{tpu_custom_call.1} parent=1 // pred_fallthru
      _
    // Predicated region
    $region26: #{tpu_custom_call.1} parent=1 // pred_check
      _
    $region27: #{tpu_custom_call.1} parent=1 // pred_check_branch
      %170 = sbr.rel (0) target = $region29
    $region28: #{tpu_custom_call.1} parent=1 // pred_region
      %172 = dma.done [#allocation3], 16
    $region29: #{tpu_custom_call.1} parent=1 // pred_fallthru
      _
    %173 = vsyncpa [#allocation3], 1

</llo_original>
